<compile_context>
chip_gen: v5e
topology: v5e:2x2
jax: 0.10.0
libtpu: 0.0.40
codegen_flags: <defaults>
</compile_context>

<pallas_src>
import math

import jax
import jax.numpy as jnp
from jax.experimental import pallas as pl
from jax.experimental.pallas import tpu as pltpu


def planar_flow_kernel(scal_ref, w_ref, u_ref, xT_ref, logpx_ref, fT_ref, logpy_ref):
    # scal_ref  (SMEM, (2,)): [b, u.w]
    # w_ref     (VMEM, (nd, 1)) f32
    # u_ref     (VMEM, (nd, 1)) f32
    # xT_ref    (VMEM, (nd, tb))        -- batch on lanes
    # logpx_ref (VMEM, (1, tb)) f32
    # fT_ref    (VMEM, (nd, tb))
    # logpy_ref (VMEM, (1, tb)) f32
    b = scal_ref[0]
    uw = scal_ref[1]

    xT = xT_ref[...].astype(jnp.float32)          # upcast once (bf16-safe on v5e)
    w_col = w_ref[...]                            # (nd, 1), broadcasts over lanes
    u_col = u_ref[...]                            # (nd, 1)

    # s = w . x per batch element  -> cross-sublane reduce (XLU), lane-dense result
    s = jnp.sum(xT * w_col, axis=0, keepdims=True) + b      # (1, tb)
    h = jnp.tanh(s)                                          # (1, tb)  EUP

    fT_ref[...] = (xT + u_col * h).astype(fT_ref.dtype)      # (nd, tb)

    # |det df/dx| = 1 + (1 - h^2) * (u . w)
    logdet = jnp.log(1.0 + (1.0 - h * h) * uw + 1e-8)        # (1, tb)
    logpy_ref[...] = logpx_ref[...] - logdet


def planar_flow(x, logpx, _u, w, b, *, tb=None):
    """Pallas implementation of PlanarFlow.forward (reverse=False, logpx given)."""
    B, nd = x.shape

    # ---- parameter glue (plain JAX, tiny) ----
    w32 = w.astype(jnp.float32)
    u_raw = _u.astype(jnp.float32)
    wu = jnp.dot(u_raw, w32)
    u = u_raw + (jax.nn.softplus(wu) - 1.0 + wu) * w32 / (jnp.sum(w32 * w32) + 1e-8)
    uw = jnp.dot(u, w32)                                      # scalar used in logdetgrad
    scal = jnp.concatenate(
        [b.reshape(1).astype(jnp.float32), uw.reshape(1)]
    ).astype(jnp.float32)                                     # (2,)

    # ---- tile selection: multi-step grid so DMA pipelines & v7x dual-TC shards,
    #      sized so double-buffered f32 in/out blocks stay well under scoped VMEM ----
    if tb is None:
        max_tb = max(128, (8 * 1024 * 1024) // (16 * nd))     # ~<=8 MiB of blocks
        tb = B
        for cand in (2048, 1024, 512, 256, 128):
            if cand <= max_tb and B % cand == 0:
                tb = cand
                break
    assert B % tb == 0
    assert tb == B or tb % 128 == 0, "lane tile must be a multiple of 128 (or full B)"

    # ---- lane-dense layout: batch on lanes ----
    xT = x.T                                                  # (nd, B)
    w_col = w32.reshape(nd, 1)
    u_col = u.reshape(nd, 1)
    logpx_row = logpx.reshape(1, B).astype(jnp.float32)

    grid = (B // tb,)
    fT, logpy_row = pl.pallas_call(
        planar_flow_kernel,
        out_shape=(
            jax.ShapeDtypeStruct((nd, B), x.dtype),
            jax.ShapeDtypeStruct((1, B), jnp.float32),
        ),
        grid_spec=pltpu.PrefetchScalarGridSpec(
            num_scalar_prefetch=0,
            grid=grid,
            in_specs=[
                pl.BlockSpec(memory_space=pltpu.MemorySpace.SMEM),   # [b, u.w]
                pl.BlockSpec((nd, 1), lambda i: (0, 0)),             # w  (resident)
                pl.BlockSpec((nd, 1), lambda i: (0, 0)),             # u  (resident)
                pl.BlockSpec((nd, tb), lambda i: (0, i)),            # x^T
                pl.BlockSpec((1, tb), lambda i: (0, i)),             # logpx row
            ],
            out_specs=[
                pl.BlockSpec((nd, tb), lambda i: (0, i)),            # f^T
                pl.BlockSpec((1, tb), lambda i: (0, i)),             # logpy row
            ],
        ),
        compiler_params=pltpu.CompilerParams(
            dimension_semantics=("parallel",)
        ),
    )(scal, w_col, u_col, xT, logpx_row)

    return fT.T, logpy_row.reshape(-1)


def planar_flow_ref(x, logpx, _u, w, b):
    """Pure-JAX reference mirroring the PyTorch forward (activation = tanh)."""
    nd = x.shape[-1]
    wu = jnp.dot(_u, w)
    u = _u + (jax.nn.softplus(wu) - 1.0 + wu) * w / (jnp.sum(w * w) + 1e-8)
    h = jnp.tanh(x @ w.reshape(nd, 1) + b)                    # (B, 1)
    f = x + u * h
    psi = (1.0 - h * h) * w                                   # d tanh(x.w+b)/dx
    u_dot_psi = psi @ u                                       # (B,)
    logpy = logpx - jnp.log(1.0 + u_dot_psi + 1e-8)
    return f, logpy


if __name__ == "__main__":
    B, nd = 8, 32

    key = jax.random.PRNGKey(0)
    k_u, k_w, k_x, k_lp = jax.random.split(key, 4)

    # Parameter init matching the module's reset_parameters().
    stdv = 1.0 / math.sqrt(nd)
    _u = jax.random.uniform(k_u, (nd,), jnp.float32, minval=-stdv, maxval=stdv)
    w = jax.random.uniform(k_w, (nd,), jnp.float32, minval=-stdv, maxval=stdv)
    b = jnp.zeros((1,), jnp.float32)

    x = jax.random.normal(k_x, (B, nd), dtype=jnp.float32)
    logpx = jax.random.normal(k_lp, (B,), dtype=jnp.float32)

    f, logpy = planar_flow(x, logpx, _u, w, b)
    f = jax.block_until_ready(f)
    logpy = jax.block_until_ready(logpy)

    f_ref, logpy_ref = planar_flow_ref(x, logpx, _u, w, b)
    assert jnp.allclose(f, f_ref, atol=1e-5, rtol=1e-5)
    assert jnp.allclose(logpy, logpy_ref, atol=1e-5, rtol=1e-5)

    print("KERNEL_OK")
</pallas_src>

<mosaic_0001>
module attributes {stable_mosaic.version = 11 : i64} {
  func.func @planar_flow_kernel(%arg0: i32, %arg1: memref<2xf32, #tpu.memory_space<smem>>, %arg2: memref<32x1xf32, #tpu.memory_space<vmem>>, %arg3: memref<32x1xf32, #tpu.memory_space<vmem>>, %arg4: memref<32x8xf32, #tpu.memory_space<vmem>>, %arg5: memref<1x8xf32, #tpu.memory_space<vmem>>, %arg6: memref<32x8xf32, #tpu.memory_space<vmem>>, %arg7: memref<1x8xf32, #tpu.memory_space<vmem>>) attributes {dimension_semantics = [#tpu.dimension_semantics<parallel>], iteration_bounds = array<i64: 1>, scalar_prefetch = 0 : i64, scratch_operands = 0 : i64, tpu.core_type = #tpu.core_type<tc>, window_params = [{transform_indices = @transform_0, window_bounds = array<i64: 2>}, {pipeline_mode = #tpu.pipeline_mode<synchronous>, transform_indices = @transform_1, window_bounds = array<i64: 32, 1>}, {pipeline_mode = #tpu.pipeline_mode<synchronous>, transform_indices = @transform_2, window_bounds = array<i64: 32, 1>}, {transform_indices = @transform_3, window_bounds = array<i64: 32, 8>}, {transform_indices = @transform_4, window_bounds = array<i64: 1, 8>}, {transform_indices = @transform_5, window_bounds = array<i64: 32, 8>}, {transform_indices = @transform_6, window_bounds = array<i64: 1, 8>}]} {
    %c0 = arith.constant 0 : index
    %0 = memref.load %arg1[%c0] : memref<2xf32, #tpu.memory_space<smem>>
    %c1 = arith.constant 1 : index
    %1 = memref.load %arg1[%c1] : memref<2xf32, #tpu.memory_space<smem>>
    %c0_0 = arith.constant 0 : index
    %c0_1 = arith.constant 0 : index
    %2 = vector.load %arg4[%c0_0, %c0_1] : memref<32x8xf32, #tpu.memory_space<vmem>>, vector<32x8xf32>
    %c0_2 = arith.constant 0 : index
    %c0_3 = arith.constant 0 : index
    %3 = vector.load %arg2[%c0_2, %c0_3] : memref<32x1xf32, #tpu.memory_space<vmem>>, vector<32x1xf32>
    %c0_4 = arith.constant 0 : index
    %c0_5 = arith.constant 0 : index
    %4 = vector.load %arg3[%c0_4, %c0_5] : memref<32x1xf32, #tpu.memory_space<vmem>>, vector<32x1xf32>
    %5 = vector.broadcast %3 : vector<32x1xf32> to vector<32x8xf32>
    %6 = arith.mulf %2, %5 : vector<32x8xf32>
    %cst = arith.constant dense<0.000000e+00> : vector<8xf32>
    %7 = vector.multi_reduction <add>, %6, %cst [0] : vector<32x8xf32> to vector<8xf32>
    %8 = vector.shape_cast %7 : vector<8xf32> to vector<1x8xf32>
    %9 = vector.broadcast %0 : f32 to vector<1x8xf32>
    %10 = arith.addf %8, %9 : vector<1x8xf32>
    %11 = math.tanh %10 : vector<1x8xf32>
    %12 = vector.broadcast %4 : vector<32x1xf32> to vector<32x8xf32>
    %13 = vector.broadcast %11 : vector<1x8xf32> to vector<32x8xf32>
    %14 = arith.mulf %12, %13 : vector<32x8xf32>
    %15 = arith.addf %2, %14 : vector<32x8xf32>
    %c0_6 = arith.constant 0 : index
    %c0_7 = arith.constant 0 : index
    %16 = vector.load %arg6[%c0_6, %c0_7] : memref<32x8xf32, #tpu.memory_space<vmem>>, vector<32x8xf32>
    tpu.vector_store %arg6[%c0_6, %c0_7], %15 {strides = array<i32>} : memref<32x8xf32, #tpu.memory_space<vmem>>, vector<32x8xf32>,
    %17 = arith.mulf %11, %11 : vector<1x8xf32>
    %cst_8 = arith.constant 1.000000e+00 : f32
    %18 = vector.broadcast %cst_8 : f32 to vector<1x8xf32>
    %19 = arith.subf %18, %17 : vector<1x8xf32>
    %20 = vector.broadcast %1 : f32 to vector<1x8xf32>
    %21 = arith.mulf %19, %20 : vector<1x8xf32>
    %cst_9 = arith.constant 1.000000e+00 : f32
    %22 = vector.broadcast %cst_9 : f32 to vector<1x8xf32>
    %23 = arith.addf %22, %21 : vector<1x8xf32>
    %cst_10 = arith.constant 9.99999993E-9 : f32
    %24 = vector.broadcast %cst_10 : f32 to vector<1x8xf32>
    %25 = arith.addf %23, %24 : vector<1x8xf32>
    %26 = math.log %25 : vector<1x8xf32>
    %c0_11 = arith.constant 0 : index
    %c0_12 = arith.constant 0 : index
    %27 = vector.load %arg5[%c0_11, %c0_12] : memref<1x8xf32, #tpu.memory_space<vmem>>, vector<1x8xf32>
    %28 = arith.subf %27, %26 : vector<1x8xf32>
    %c0_13 = arith.constant 0 : index
    %c0_14 = arith.constant 0 : index
    %29 = vector.load %arg7[%c0_13, %c0_14] : memref<1x8xf32, #tpu.memory_space<vmem>>, vector<1x8xf32>
    tpu.vector_store %arg7[%c0_13, %c0_14], %28 {strides = array<i32>} : memref<1x8xf32, #tpu.memory_space<vmem>>, vector<1x8xf32>,
    return
  }
  func.func @transform_0(%arg0: i32) -> i32 {
    %c0_i32 = arith.constant 0 : i32
    %c0_i32_0 = arith.constant 0 : i32
    return %c0_i32 : i32
  }
  func.func @transform_1(%arg0: i32) -> (i32, i32) {
    %c0_i32 = arith.constant 0 : i32
    %c0_i32_0 = arith.constant 0 : i32
    %c0_i32_1 = arith.constant 0 : i32
    return %c0_i32, %c0_i32_0 : i32, i32
  }
  func.func @transform_2(%arg0: i32) -> (i32, i32) {
    %c0_i32 = arith.constant 0 : i32
    %c0_i32_0 = arith.constant 0 : i32
    %c0_i32_1 = arith.constant 0 : i32
    return %c0_i32, %c0_i32_0 : i32, i32
  }
  func.func @transform_3(%arg0: i32) -> (i32, i32) {
    %c0_i32 = arith.constant 0 : i32
    %c0_i32_0 = arith.constant 0 : i32
    return %c0_i32, %arg0 : i32, i32
  }
  func.func @transform_4(%arg0: i32) -> (i32, i32) {
    %c0_i32 = arith.constant 0 : i32
    %c0_i32_0 = arith.constant 0 : i32
    return %c0_i32, %arg0 : i32, i32
  }
  func.func @transform_5(%arg0: i32) -> (i32, i32) {
    %c0_i32 = arith.constant 0 : i32
    %c0_i32_0 = arith.constant 0 : i32
    return %c0_i32, %arg0 : i32, i32
  }
  func.func @transform_6(%arg0: i32) -> (i32, i32) {
    %c0_i32 = arith.constant 0 : i32
    %c0_i32_0 = arith.constant 0 : i32
    return %c0_i32, %arg0 : i32, i32
  }
}

</mosaic_0001>

<llo_original>
// kernel: tpu_custom_call.1
$region0: #{tpu_custom_call.1}
  #allocation0 [shape = 'u32[]', space=smem, size = 0x4, offset = 0x4, fixed_abs, tag = 'smem constant byte address 0x4 - core index']
  #allocation1 [shape = 'u32[72,128]{1,0:T(1,128)}', space=vmem, size = 0x9000, scoped, tag = 'internal scratch']
  %s0 = inlined_call_operand.vmem [shape: f32[2], index: 0, kind: input, shape index: {}]
  %s1 = inlined_call_operand.vmem [shape: f32[32,1], index: 1, kind: input, shape index: {}]
  %s2 = inlined_call_operand.vmem [shape: f32[32,1], index: 2, kind: input, shape index: {}]
  %s3 = inlined_call_operand.vmem [shape: f32[32,8], index: 3, kind: input, shape index: {}]
  %s4 = inlined_call_operand.vmem [shape: f32[1,8], index: 4, kind: input, shape index: {}]
  %s5 = inlined_call_operand.vmem [shape: f32[32,8], index: 5, kind: output, shape index: {0}]
  %s6 = inlined_call_operand.hbm [shape: f32[1,8], index: 6, kind: output, shape index: {1}]
  %7 = xla_tuple %s5, %s6
  %s8 = sld [smem:[#allocation0]]
  $region42: #{tpu_custom_call.1} parent=0
    _
  %s10 = ssub.s32 1, %s8
  %s11 = scalar_select 0, %s10, %s8
  $region1: #{tpu_custom_call.1} parent=0
    #allocation2 [shape = 'u8[512]{0}', space=smem, size = 0x200, scoped, tag = 'input window, operand 0, single buffered']
    #allocation3 [shape = 's32[1]{0}', space=sflag, size = 0x4, scoped, tag = 'scoped memory for tpu_custom_call.1']
    #allocation4 [shape = 's32[1]{0}', space=sflag, size = 0x4, scoped, tag = 'scoped memory for tpu_custom_call.1']
    #allocation5 [shape = 'u8[512]{0}', space=vmem, size = 0x400, scoped, tag = 'output window, operand 1, single buffered']
    %12 = vsyncpa [#allocation4], 0
    %13 = vsyncpa [#allocation3], 0
    // Predicated region
    $region2: #{tpu_custom_call.1} parent=1 // pred_check
      _
    $region3: #{tpu_custom_call.1} parent=1 // pred_check_branch
      %15 = sbr.rel (0) target = $region5
    $region4: #{tpu_custom_call.1} parent=1 // pred_region
      %17 = vsyncadd [#allocation4], 0
      %s19 = sshll.u32 %s0, 4
      %s20 = int_to_ptr.vmem [resolvable:$true] %s19
      %22 = dma.vmem_to_smem %s20, 16, [#allocation2], [#allocation4]
    $region5: #{tpu_custom_call.1} parent=1 // pred_fallthru
      _
    // Predicated region
    $region6: #{tpu_custom_call.1} parent=1 // pred_check
      _
    $region7: #{tpu_custom_call.1} parent=1 // pred_check_branch
      %24 = sbr.rel (0) target = $region9
    $region8: #{tpu_custom_call.1} parent=1 // pred_region
      _
    $region9: #{tpu_custom_call.1} parent=1 // pred_fallthru
      _
    // Predicated region
    $region10: #{tpu_custom_call.1} parent=1 // pred_check
      _
    $region11: #{tpu_custom_call.1} parent=1 // pred_check_branch
      %26 = sbr.rel (0) target = $region13
    $region12: #{tpu_custom_call.1} parent=1 // pred_region
      _
    $region13: #{tpu_custom_call.1} parent=1 // pred_fallthru
      _
    // Predicated region
    $region14: #{tpu_custom_call.1} parent=1 // pred_check
      _
    $region15: #{tpu_custom_call.1} parent=1 // pred_check_branch
      %28 = sbr.rel (0) target = $region17
    $region16: #{tpu_custom_call.1} parent=1 // pred_region
      _
    $region17: #{tpu_custom_call.1} parent=1 // pred_fallthru
      _
    // Predicated region
    $region18: #{tpu_custom_call.1} parent=1 // pred_check
      _
    $region19: #{tpu_custom_call.1} parent=1 // pred_check_branch
      %30 = sbr.rel (0) target = $region21
    $region20: #{tpu_custom_call.1} parent=1 // pred_region
      _
    $region21: #{tpu_custom_call.1} parent=1 // pred_fallthru
      _
    // Predicated region
    $region22: #{tpu_custom_call.1} parent=1 // pred_check
      _
    $region23: #{tpu_custom_call.1} parent=1 // pred_check_branch
      %32 = sbr.rel (0) target = $region25
    $region24: #{tpu_custom_call.1} parent=1 // pred_region
      %34 = dma.done [#allocation4], 16
    $region25: #{tpu_custom_call.1} parent=1 // pred_fallthru
      _
    %35 = sfence
    %s36 = sld [smem:[#allocation2]]
    %s37 = sld [smem:[#allocation2 + $0x1]]
    %v38 = vld [vmem:[%s3] sm:$0xff]
    %v39 = vld [vmem:[%s3 + $0x8] sm:$0xff]
    %v40 = vld [vmem:[%s3 + $0x10] sm:$0xff]
    %v41 = vld [vmem:[%s3 + $0x18] sm:$0xff]
    %v42 = vld [vmem:[%s1] sm:$0xff]
    %v43 = vld [vmem:[%s1 + $0x8] sm:$0xff]
    %v44 = vld [vmem:[%s1 + $0x10] sm:$0xff]
    %v45 = vld [vmem:[%s1 + $0x18] sm:$0xff]
    %v46 = vld [vmem:[%s2] sm:$0xff]
    %v47 = vld [vmem:[%s2 + $0x8] sm:$0xff]
    %v48 = vld [vmem:[%s2 + $0x10] sm:$0xff]
    %v49 = vld [vmem:[%s2 + $0x18] sm:$0xff]
    %51 = vset.pattern.permute.xlu0 0
    %52 = vperm.xlu0 %51, %v42
    %v53 = vpop.permute.xlu0 %52
    %56 = vset.pattern.permute.xlu0 0
    %57 = vperm.xlu0 %56, %v43
    %v58 = vpop.permute.xlu0 %57
    %61 = vset.pattern.permute.xlu0 0
    %62 = vperm.xlu0 %61, %v44
    %v63 = vpop.permute.xlu0 %62
    %66 = vset.pattern.permute.xlu0 0
    %67 = vperm.xlu0 %66, %v45
    %v68 = vpop.permute.xlu0 %67
    %v70 = vmul.f32 %v38, %v53
    %v71 = vmul.f32 %v39, %v58
    %v72 = vmul.f32 %v40, %v63
    %v73 = vmul.f32 %v41, %v68
    %vm74 = vcmask 64512
    %v75 = vsel %vm74, %v70, 0.0
    %v76 = vsel %vm74, %v71, 0.0
    %v77 = vadd.f32 %v75, %v76
    %v78 = vsel %vm74, %v72, 0.0
    %v79 = vadd.f32 %v77, %v78
    %v80 = vsel %vm74, %v73, 0.0
    %v81 = vadd.f32 %v79, %v80
    %v82 = vrot.slane %v81, 4
    %v83 = vadd.f32 %v81, %v82
    %v84 = vrot.slane %v83, 2
    %v85 = vadd.f32 %v83, %v84
    %v86 = vrot.slane %v85, 1
    %v87 = vadd.f32 %v85, %v86
    %v88 = vstv %s36
    %v89 = vadd.f32 %v87, %v88
    %v90 = vtanh.pop %v89
    %92 = vset.pattern.permute.xlu0 0
    %93 = vperm.xlu0 %92, %v46
    %v94 = vpop.permute.xlu0 %93
    %97 = vset.pattern.permute.xlu0 0
    %98 = vperm.xlu0 %97, %v47
    %v99 = vpop.permute.xlu0 %98
    %102 = vset.pattern.permute.xlu0 0
    %103 = vperm.xlu0 %102, %v48
    %v104 = vpop.permute.xlu0 %103
    %107 = vset.pattern.permute.xlu0 0
    %108 = vperm.xlu0 %107, %v49
    %v109 = vpop.permute.xlu0 %108
    %v111 = vmul.f32 %v94, %v90
    %v112 = vmul.f32 %v99, %v90
    %v113 = vmul.f32 %v104, %v90
    %v114 = vmul.f32 %v109, %v90
    %v115 = vadd.f32 %v38, %v111
    %v116 = vadd.f32 %v39, %v112
    %v117 = vadd.f32 %v40, %v113
    %v118 = vadd.f32 %v41, %v114
    %119 = vst.msk [vmem:[%s5] sm:$0xff] %vm74, %v115
    %120 = vst.msk [vmem:[%s5 + $0x8] sm:$0xff] %vm74, %v116
    %121 = vst.msk [vmem:[%s5 + $0x10] sm:$0xff] %vm74, %v117
    %122 = vst.msk [vmem:[%s5 + $0x18] sm:$0xff] %vm74, %v118
    %v123 = vmul.f32 %v90, %v90
    %v124 = vsub.f32 1.0, %v123
    %v125 = vstv %s37
    %v126 = vmul.f32 %v124, %v125
    %v127 = vadd.f32 %v126, 1.0
    %v128 = vadd.f32 %v127, 1e-08
    %v129 = vlog2.pop %v128
    %v130 = vmul.f32 %v129, 0.6931472
    %v131 = vld [vmem:[%s4] sm:$0x1]
    %v132 = vsub.f32 %v131, %v130
    %vm133 = vcmask 57344
    %134 = vst.msk [vmem:[#allocation5] sm:$0x1] %vm133, %v132
    // Predicated region
    $region26: #{tpu_custom_call.1} parent=1 // pred_check
      _
    $region27: #{tpu_custom_call.1} parent=1 // pred_check_branch
      %136 = sbr.rel (0) target = $region29
    $region28: #{tpu_custom_call.1} parent=1 // pred_region
      _
    $region29: #{tpu_custom_call.1} parent=1 // pred_fallthru
      _
    // Predicated region
    $region30: #{tpu_custom_call.1} parent=1 // pred_check
      _
    $region31: #{tpu_custom_call.1} parent=1 // pred_check_branch
      %138 = sbr.rel (0) target = $region33
    $region32: #{tpu_custom_call.1} parent=1 // pred_region
      %140 = vsyncadd [#allocation3], 0
      %s142 = sshll.u32 [#allocation5], 4
      %s143 = int_to_ptr.vmem [resolvable:$true] %s142
      %s144 = sshll.u32 %s6, 4
      %s145 = int_to_ptr.hbm [resolvable:$true] %s144
      %147 = dma.vmem_to_hbm [thread:$0]  %s143, 16, %s145, [#allocation3]
    $region33: #{tpu_custom_call.1} parent=1 // pred_fallthru
      _
    // Predicated region
    $region34: #{tpu_custom_call.1} parent=1 // pred_check
      _
    $region35: #{tpu_custom_call.1} parent=1 // pred_check_branch
      %149 = sbr.rel (0) target = $region37
    $region36: #{tpu_custom_call.1} parent=1 // pred_region
      _
    $region37: #{tpu_custom_call.1} parent=1 // pred_fallthru
      _
    // Predicated region
    $region38: #{tpu_custom_call.1} parent=1 // pred_check
      _
    $region39: #{tpu_custom_call.1} parent=1 // pred_check_branch
      %151 = sbr.rel (0) target = $region41
    $region40: #{tpu_custom_call.1} parent=1 // pred_region
      %153 = dma.done [#allocation3], 16
    $region41: #{tpu_custom_call.1} parent=1 // pred_fallthru
      _
    %154 = vsyncpa [#allocation3], 1
    %155 = vsyncpa [#allocation4], 1

</llo_original>
